<compile_context>
chip_gen: v5e
topology: v5e:2x2
jax: 0.10.0
libtpu: 0.0.40
codegen_flags: <defaults>
</compile_context>

<pallas_src>
import functools

import jax
import jax.numpy as jnp
from jax import lax
from jax.experimental import pallas as pl
from jax.experimental.pallas import tpu as pltpu

_LANES = 128
_SUBLANES = 8
_SLAB_ROWS = 32                        # innermost unrolled step: (32,128) f32 = 4 vregs
_SLABS_PER_CHUNK = 8                   # 256 rows per fori_loop chunk
_CHUNK_ROWS = _SLAB_ROWS * _SLABS_PER_CHUNK
_MAX_TILE_ROWS = 8192                  # (8192,128) f32 logits block = 4 MiB
_MIN_SPLIT_TILE_ROWS = 1024            # never shrink a tile below this for parallelism
_MIN_PARALLEL_TILES = 4                # target (b, t) units for v7x's 2 TensorCores
_VMEM_LIMIT_BYTES = 48 * 1024 * 1024   # <= v7x physical 64 MiB, fine on v5e/v6e


def _ceil_div(a, b):
    return -(-a // b)


def _round_up(a, b):
    return _ceil_div(a, b) * b


def _tversky_sums_kernel(x_ref, lab_ref, out_ref, *, num_classes, ignore_index,
                         check_ignore, slabs_per_chunk, num_chunks):
    """Per-(batch, pixel-tile) partial sums, accumulated across the class axis.

    x_ref   : (1, tile_rows, 128) logits tile (f32 or bf16, VMEM)
    lab_ref : (1, tile_rows, 128) int32 labels (block index constant across c)
    out_ref : (1, 3, 8, 128) f32 accumulator block, resident across the c axis
        plane 0 += sigmoid(x) - 0.5          (exactly 0 for padded logits)
        plane 1 += sigmoid(x) * onehot(lab)  (TP contribution)
        plane 2  = count of valid labelled pixels (written once, at c == 0)
    """
    c = pl.program_id(2)

    def slab_offset(ci, si):
        return pl.multiple_of((ci * slabs_per_chunk + si) * _SLAB_ROWS,
                              _SLAB_ROWS)

    def _fold(v):
        # (32, 128) -> (8, 128): 3 vreg-wise VPU adds, no XLU.
        return v.reshape(_SLAB_ROWS // _SUBLANES, _SUBLANES, _LANES).sum(axis=0)

    @pl.when(c == 0)
    def _init():
        out_ref[...] = jnp.zeros_like(out_ref)

        # Valid-pixel count (class independent): computed once per (b, t) from
        # the already-resident label tile, so labels are read from HBM once.
        def cnt_chunk(ci, acc):
            def cnt_slab(si, a):
                lab = lab_ref[0, pl.ds(slab_offset(ci, si), _SLAB_ROWS), :]
                valid = jnp.logical_and(lab >= 0, lab < num_classes)
                valid = jnp.logical_and(valid, lab != ignore_index)
                return a + valid.astype(jnp.float32)
            return lax.fori_loop(0, slabs_per_chunk, cnt_slab, acc, unroll=True)

        cnt = lax.fori_loop(0, num_chunks, cnt_chunk,
                            jnp.zeros((_SLAB_ROWS, _LANES), jnp.float32))
        out_ref[0, 2] = _fold(cnt)

    # Main single-pass chunked accumulation: one VMEM load, one tanh (EUP),
    # one compare(/select) and two adds per element; accumulators stay in
    # vregs, so nothing spills and no second sigmoid is needed.
    def chunk(ci, carry):
        def slab(si, inner):
            acc_h, acc_tp = inner
            r0 = slab_offset(ci, si)
            x = x_ref[0, pl.ds(r0, _SLAB_ROWS), :].astype(jnp.float32)
            lab = lab_ref[0, pl.ds(r0, _SLAB_ROWS), :]
            # sigmoid(x) = 0.5 * tanh(0.5 * x) + 0.5 : single EUP op.
            h = 0.5 * jnp.tanh(0.5 * x)            # == sigmoid(x) - 0.5
            m = lab == c
            if check_ignore:
                m = jnp.logical_and(m, lab != ignore_index)
            acc_h = acc_h + h
            acc_tp = acc_tp + jnp.where(m, h + 0.5, 0.0)
            return acc_h, acc_tp
        return lax.fori_loop(0, slabs_per_chunk, slab, carry, unroll=True)

    zero = jnp.zeros((_SLAB_ROWS, _LANES), jnp.float32)
    acc_h, acc_tp = lax.fori_loop(0, num_chunks, chunk, (zero, zero))

    out_ref[0, 0] += _fold(acc_h)
    out_ref[0, 1] += _fold(acc_tp)


def _tversky_sums(logits_bcp, labels_bp, *, ignore_index):
    """Return (sum(sigmoid(x)), TP, sum(onehot)) for logits [B, C, P] and
    integer labels [B, P] without ever materializing the one-hot target."""
    B, C, P = logits_bcp.shape

    x = logits_bcp
    if x.dtype not in (jnp.float32, jnp.bfloat16):
        x = x.astype(jnp.float32)
    # TODO(synk): on v6e/v7x a bf16 input could keep tanh/compare/select in
    # bf16 (f32 accumulate only); that needs chip detection, so bf16 inputs
    # are streamed as bf16 and upcast per-slab in-kernel instead.
    lab = labels_bp.astype(jnp.int32)

    rows = _ceil_div(P, _LANES)

    # Number of pixel tiles: big tiles to amortize the ~0.35 us per-grid-step
    # overhead, but give the two "parallel" grid axes >= _MIN_PARALLEL_TILES
    # independent (b, t) units for v7x's 2 TensorCores — without shrinking a
    # tile below _MIN_SPLIT_TILE_ROWS rows (which would hurt v5e/v6e).
    num_pt = _ceil_div(rows, _MAX_TILE_ROWS)
    if B * num_pt < _MIN_PARALLEL_TILES:
        target = min(_ceil_div(_MIN_PARALLEL_TILES, B),
                     max(rows // _MIN_SPLIT_TILE_ROWS, 1))
        num_pt = max(num_pt, target)

    rows_per_tile = _ceil_div(rows, num_pt)
    if rows_per_tile <= _CHUNK_ROWS:
        tile_rows = _round_up(rows_per_tile, _SLAB_ROWS)
        slabs_per_chunk = tile_rows // _SLAB_ROWS
        num_chunks = 1
    else:
        tile_rows = _round_up(rows_per_tile, _CHUNK_ROWS)
        slabs_per_chunk = _SLABS_PER_CHUNK
        num_chunks = tile_rows // _CHUNK_ROWS
    rows_pad = tile_rows * num_pt
    pad = rows_pad * _LANES - P

    if pad:
        # INVARIANT: padded logits MUST be exactly 0.0 — tanh(0.5*0) == 0, so
        # they contribute nothing to plane 0 and sum(sigmoid) is recovered
        # exactly in the epilogue as plane0 + 0.5 * B * C * P.  Padded labels
        # are -1, so they never hit a class or the valid-pixel count.
        x = jnp.pad(x, ((0, 0), (0, 0), (0, pad)))
        lab = jnp.pad(lab, ((0, 0), (0, pad)), constant_values=-1)

    x = x.reshape(B * C, rows_pad, _LANES)
    lab = lab.reshape(B, rows_pad, _LANES)

    kernel = functools.partial(
        _tversky_sums_kernel,
        num_classes=C,
        ignore_index=ignore_index,
        check_ignore=0 <= ignore_index < C,
        slabs_per_chunk=slabs_per_chunk,
        num_chunks=num_chunks)

    out = pl.pallas_call(
        kernel,
        out_shape=jax.ShapeDtypeStruct((B * num_pt, 3, _SUBLANES, _LANES),
                                       jnp.float32),
        grid_spec=pltpu.PrefetchScalarGridSpec(
            num_scalar_prefetch=0,
            # Class axis innermost: the label block index is constant across
            # it (label DMA issued once per (batch, pixel-tile)) and the
            # output block accumulates across it.
            grid=(B, num_pt, C),
            in_specs=[
                pl.BlockSpec((1, tile_rows, _LANES),
                             lambda b, t, c: (b * C + c, t, 0)),
                pl.BlockSpec((1, tile_rows, _LANES),
                             lambda b, t, c: (b, t, 0)),
            ],
            out_specs=pl.BlockSpec((1, 3, _SUBLANES, _LANES),
                                   lambda b, t, c: (b * num_pt + t, 0, 0, 0)),
        ),
        compiler_params=pltpu.CompilerParams(
            dimension_semantics=("parallel", "parallel", "arbitrary"),
            vmem_limit_bytes=_VMEM_LIMIT_BYTES),
    )(x, lab)

    partials = out.sum(axis=(0, 2, 3))            # tiny (3,) epilogue reduce
    sum_p = partials[0] + 0.5 * (B * C * P)       # plane 0 held sigmoid - 0.5
    tp = partials[1]
    sum_t = partials[2]
    return sum_p, tp, sum_t


class TverskyLoss:
    """JAX/Pallas port of the (sigmoid-based) TverskyLoss spec, forward only."""

    def __init__(self, use_focal=False, reduction='mean', alpha=0.5, beta=0.5,
                 gamma=1.0, smooth=1.0, loss_weight=1.0):
        self.use_focal = use_focal
        self.reduction = reduction
        self.alpha = alpha
        self.beta = beta
        self.gamma = gamma
        self.smooth = smooth
        self.loss_weight = loss_weight

    def __call__(self, inputs, targets, weight=None, reduction_override=None,
                 avg_factor=None, ignore_index=255):
        assert reduction_override in (None, 'none', 'mean', 'sum')
        reduction = reduction_override if reduction_override else self.reduction
        # reduce_loss on a 0-d loss is identity for 'none'/'mean'/'sum'.
        _ = reduction
        # `weight` / `avg_factor` do not enter the reference tversky_loss value.
        _ = (weight, avg_factor)

        # The reference forward only supports pred [N,C,H,W] + label [N,H,W]
        # or pred [N,C] + label [N].
        assert (inputs.ndim == 4 and targets.ndim == 3) or \
               (inputs.ndim == 2 and targets.ndim == 1), (
            'Only pred shape [N, C], label shape [N] or pred shape '
            '[N, C, H, W], label shape [N, H, W] are supported')

        if inputs.ndim == 4:
            N, C, H, W = inputs.shape
            logits_bcp = inputs.reshape(N, C, H * W)
            labels_bp = targets.reshape(N, H * W)
        else:
            N, C = inputs.shape
            # Sums are permutation invariant: treat [N, C] as a 1-batch,
            # N-pixel, C-class image.
            logits_bcp = inputs.T.reshape(1, C, N)
            labels_bp = targets.reshape(1, N)

        # Hot path (Pallas): sum(sigmoid), TP = sum(p * onehot), sum(onehot).
        sum_p, tp, sum_t = _tversky_sums(logits_bcp, labels_bp,
                                         ignore_index=ignore_index)

        fp = sum_p - tp          # == sum((1 - t) * p)
        fn = sum_t - tp          # == sum(t * (1 - p))

        tversky = (tp + self.smooth) / (
            tp + self.alpha * fp + self.beta * fn + self.smooth)
        if self.use_focal:
            loss = (1.0 - tversky) ** self.gamma
        else:
            loss = 1.0 - tversky
        return self.loss_weight * loss


def _reference_loss(inputs, targets, module, ignore_index=255):
    """Pure-JAX reference (explicit one-hot + direct TP/FP/FN sums)."""
    num_classes = inputs.shape[1]
    class_ids = jnp.arange(num_classes, dtype=jnp.int32)
    tgt = targets.astype(jnp.int32)
    valid = (tgt >= 0) & (tgt != ignore_index)
    if inputs.ndim == 4:
        onehot = (tgt[:, None, :, :] == class_ids[None, :, None, None]) \
            & valid[:, None, :, :]
    else:
        onehot = (tgt[:, None] == class_ids[None, :]) & valid[:, None]
    p = jax.nn.sigmoid(inputs.astype(jnp.float32)).reshape(-1)
    t = onehot.astype(jnp.float32).reshape(-1)
    tp = jnp.sum(p * t)
    fp = jnp.sum((1.0 - t) * p)
    fn = jnp.sum(t * (1.0 - p))
    tversky = (tp + module.smooth) / (
        tp + module.alpha * fp + module.beta * fn + module.smooth)
    loss = (1.0 - tversky) ** module.gamma if module.use_focal else 1.0 - tversky
    return module.loss_weight * loss


if __name__ == "__main__":
    key = jax.random.PRNGKey(0)
    k1, k2, k3, k4, k5, k6 = jax.random.split(key, 6)

    # Case 1: pred [N, C, H, W] + labels [N, H, W] with ignore pixels
    # (exercises the padded single-chunk path).
    N, C, H, W = 2, 4, 16, 16
    logits = jax.random.normal(k1, (N, C, H, W), dtype=jnp.float32)
    labels = jax.random.randint(k2, (N, H, W), 0, C, dtype=jnp.int32)
    labels = labels.at[0, 0, :4].set(255)          # a few ignore_index pixels
    m1 = TverskyLoss(use_focal=False, reduction='mean',
                     alpha=0.3, beta=0.7, gamma=1.0, smooth=1.0,
                     loss_weight=1.0)
    loss1 = jax.block_until_ready(m1(logits, labels, ignore_index=255))
    ref1 = jax.block_until_ready(_reference_loss(logits, labels, m1))
    assert jnp.allclose(loss1, ref1, rtol=1e-5, atol=1e-5), (loss1, ref1)

    # Case 2: pred [N, C] + labels [N] (focal variant).
    N2, C2 = 8, 5
    logits2 = jax.random.normal(k3, (N2, C2), dtype=jnp.float32)
    labels2 = jax.random.randint(k4, (N2,), 0, C2, dtype=jnp.int32)
    m2 = TverskyLoss(use_focal=True, alpha=0.5, beta=0.5, gamma=2.0,
                     smooth=1.0, loss_weight=0.5)
    loss2 = jax.block_until_ready(m2(logits2, labels2, ignore_index=255))
    ref2 = jax.block_until_ready(_reference_loss(logits2, labels2, m2))
    assert jnp.allclose(loss2, ref2, rtol=1e-5, atol=1e-5), (loss2, ref2)

    # Case 3: larger spatial extent, exercises the multi-chunk fori_loop path.
    N3, C3, H3, W3 = 1, 3, 192, 192
    logits3 = jax.random.normal(k5, (N3, C3, H3, W3), dtype=jnp.float32)
    labels3 = jax.random.randint(k6, (N3, H3, W3), 0, C3, dtype=jnp.int32)
    labels3 = labels3.at[0, :2, :].set(255)
    m3 = TverskyLoss(alpha=0.7, beta=0.3, gamma=1.0, smooth=1.0)
    loss3 = jax.block_until_ready(m3(logits3, labels3, ignore_index=255))
    ref3 = jax.block_until_ready(_reference_loss(logits3, labels3, m3))
    assert jnp.allclose(loss3, ref3, rtol=1e-5, atol=1e-5), (loss3, ref3)

    print("KERNEL_OK")
</pallas_src>

<mosaic_0001>
module attributes {stable_mosaic.version = 11 : i64} {
  func.func @_tversky_sums_kernel(%arg0: i32, %arg1: i32, %arg2: i32, %arg3: memref<1x32x128xf32, #tpu.memory_space<vmem>>, %arg4: memref<1x32x128xi32, #tpu.memory_space<vmem>>, %arg5: memref<1x3x8x128xf32, #tpu.memory_space<vmem>>) attributes {dimension_semantics = [#tpu.dimension_semantics<parallel>, #tpu.dimension_semantics<parallel>, #tpu.dimension_semantics<arbitrary>], iteration_bounds = array<i64: 2, 1, 4>, scalar_prefetch = 0 : i64, scratch_operands = 0 : i64, tpu.core_type = #tpu.core_type<tc>, window_params = [{transform_indices = @transform_0, window_bounds = array<i64: 1, 32, 128>}, {transform_indices = @transform_1, window_bounds = array<i64: 1, 32, 128>}, {transform_indices = @transform_2, window_bounds = array<i64: 1, 3, 8, 128>}]} {
    %c0_i32 = arith.constant 0 : i32
    %0 = arith.cmpi eq, %arg2, %c0_i32 : i32
    %1 = arith.extui %0 : i1 to i32
    %c0_i32_0 = arith.constant 0 : i32
    %2 = arith.cmpi ne, %1, %c0_i32_0 : i32
    scf.if %2 {
      %cst_29 = arith.constant 0.000000e+00 : f32
      %43 = vector.broadcast %cst_29 : f32 to vector<1x3x8x128xf32>
      %c0_30 = arith.constant 0 : index
      %c0_31 = arith.constant 0 : index
      %c0_32 = arith.constant 0 : index
      %c0_33 = arith.constant 0 : index
      %44 = vector.load %arg5[%c0_30, %c0_31, %c0_32, %c0_33] : memref<1x3x8x128xf32, #tpu.memory_space<vmem>>, vector<1x3x8x128xf32>
      tpu.vector_store %arg5[%c0_30, %c0_31, %c0_32, %c0_33], %43 {strides = array<i32>} : memref<1x3x8x128xf32, #tpu.memory_space<vmem>>, vector<1x3x8x128xf32>,
      %cst_34 = arith.constant 0.000000e+00 : f32
      %45 = vector.broadcast %cst_34 : f32 to vector<32x128xf32>
      %c0_i32_35 = arith.constant 0 : i32
      %c0_i32_36 = arith.constant 0 : i32
      %c1_i32_37 = arith.constant 1 : i32
      %46 = arith.muli %c0_i32_35, %c1_i32_37 : i32
      %47 = arith.addi %46, %c0_i32_36 : i32
      %c32_i32_38 = arith.constant 32 : i32
      %48 = arith.muli %47, %c32_i32_38 : i32
      %49 = tpu.assume_multiple %48, 32 : i32
      %c0_39 = arith.constant 0 : index
      %50 = arith.index_cast %49 : i32 to index
      %c0_40 = arith.constant 0 : index
      %51 = vector.load %arg4[%c0_39, %50, %c0_40] : memref<1x32x128xi32, #tpu.memory_space<vmem>>, vector<1x32x128xi32>
      %52 = vector.shape_cast %51 : vector<1x32x128xi32> to vector<32x128xi32>
      %c0_i32_41 = arith.constant 0 : i32
      %53 = vector.broadcast %c0_i32_41 : i32 to vector<32x128xi32>
      %54 = arith.cmpi sge, %52, %53 : vector<32x128xi32>
      %c4_i32 = arith.constant 4 : i32
      %55 = vector.broadcast %c4_i32 : i32 to vector<32x128xi32>
      %56 = arith.cmpi slt, %52, %55 : vector<32x128xi32>
      %57 = arith.andi %54, %56 : vector<32x128xi1>
      %c255_i32 = arith.constant 255 : i32
      %58 = vector.broadcast %c255_i32 : i32 to vector<32x128xi32>
      %59 = arith.cmpi ne, %52, %58 : vector<32x128xi32>
      %60 = arith.andi %57, %59 : vector<32x128xi1>
      %61 = arith.extui %60 : vector<32x128xi1> to vector<32x128xi32>
      %62 = arith.sitofp %61 : vector<32x128xi32> to vector<32x128xf32>
      %63 = arith.addf %45, %62 : vector<32x128xf32>
      %c1_i32_42 = arith.constant 1 : i32
      %c1_i32_43 = arith.constant 1 : i32
      %64 = vector.shape_cast %63 : vector<32x128xf32> to vector<4x8x128xf32>
      %cst_44 = arith.constant dense<0.000000e+00> : vector<8x128xf32>
      %65 = vector.multi_reduction <add>, %64, %cst_44 [0] : vector<4x8x128xf32> to vector<8x128xf32>
      %c0_45 = arith.constant 0 : index
      %c2 = arith.constant 2 : index
      %c0_46 = arith.constant 0 : index
      %c0_47 = arith.constant 0 : index
      %66 = vector.load %arg5[%c0_45, %c2, %c0_46, %c0_47] : memref<1x3x8x128xf32, #tpu.memory_space<vmem>>, vector<1x1x8x128xf32>
      %67 = vector.shape_cast %66 : vector<1x1x8x128xf32> to vector<8x128xf32>
      %68 = vector.shape_cast %65 : vector<8x128xf32> to vector<1x1x8x128xf32>
      tpu.vector_store %arg5[%c0_45, %c2, %c0_46, %c0_47], %68 {strides = array<i32>} : memref<1x3x8x128xf32, #tpu.memory_space<vmem>>, vector<1x1x8x128xf32>,
    } else {
    }
    %cst = arith.constant 0.000000e+00 : f32
    %3 = vector.broadcast %cst : f32 to vector<32x128xf32>
    %c0_i32_1 = arith.constant 0 : i32
    %c0_i32_2 = arith.constant 0 : i32
    %c1_i32 = arith.constant 1 : i32
    %4 = arith.muli %c0_i32_1, %c1_i32 : i32
    %5 = arith.addi %4, %c0_i32_2 : i32
    %c32_i32 = arith.constant 32 : i32
    %6 = arith.muli %5, %c32_i32 : i32
    %7 = tpu.assume_multiple %6, 32 : i32
    %c0 = arith.constant 0 : index
    %8 = arith.index_cast %7 : i32 to index
    %c0_3 = arith.constant 0 : index
    %9 = vector.load %arg3[%c0, %8, %c0_3] : memref<1x32x128xf32, #tpu.memory_space<vmem>>, vector<1x32x128xf32>
    %10 = vector.shape_cast %9 : vector<1x32x128xf32> to vector<32x128xf32>
    %c0_4 = arith.constant 0 : index
    %11 = arith.index_cast %7 : i32 to index
    %c0_5 = arith.constant 0 : index
    %12 = vector.load %arg4[%c0_4, %11, %c0_5] : memref<1x32x128xi32, #tpu.memory_space<vmem>>, vector<1x32x128xi32>
    %13 = vector.shape_cast %12 : vector<1x32x128xi32> to vector<32x128xi32>
    %cst_6 = arith.constant 5.000000e-01 : f32
    %14 = vector.broadcast %cst_6 : f32 to vector<32x128xf32>
    %15 = arith.mulf %14, %10 : vector<32x128xf32>
    %16 = math.tanh %15 : vector<32x128xf32>
    %cst_7 = arith.constant 5.000000e-01 : f32
    %17 = vector.broadcast %cst_7 : f32 to vector<32x128xf32>
    %18 = arith.mulf %17, %16 : vector<32x128xf32>
    %19 = vector.broadcast %arg2 : i32 to vector<32x128xi32>
    %20 = arith.cmpi eq, %13, %19 : vector<32x128xi32>
    %21 = arith.addf %3, %18 : vector<32x128xf32>
    %cst_8 = arith.constant 5.000000e-01 : f32
    %22 = vector.broadcast %cst_8 : f32 to vector<32x128xf32>
    %23 = arith.addf %18, %22 : vector<32x128xf32>
    %cst_9 = arith.constant 0.000000e+00 : f32
    %24 = vector.broadcast %cst_9 : f32 to vector<32x128xf32>
    %25 = arith.select %20, %23, %24 : vector<32x128xi1>, vector<32x128xf32>
    %26 = arith.addf %3, %25 : vector<32x128xf32>
    %c1_i32_10 = arith.constant 1 : i32
    %c1_i32_11 = arith.constant 1 : i32
    %c0_12 = arith.constant 0 : index
    %c0_13 = arith.constant 0 : index
    %c0_14 = arith.constant 0 : index
    %c0_15 = arith.constant 0 : index
    %27 = vector.load %arg5[%c0_12, %c0_13, %c0_14, %c0_15] : memref<1x3x8x128xf32, #tpu.memory_space<vmem>>, vector<1x1x8x128xf32>
    %28 = vector.shape_cast %27 : vector<1x1x8x128xf32> to vector<8x128xf32>
    %29 = vector.shape_cast %21 : vector<32x128xf32> to vector<4x8x128xf32>
    %cst_16 = arith.constant dense<0.000000e+00> : vector<8x128xf32>
    %30 = vector.multi_reduction <add>, %29, %cst_16 [0] : vector<4x8x128xf32> to vector<8x128xf32>
    %31 = arith.addf %28, %30 : vector<8x128xf32>
    %c0_17 = arith.constant 0 : index
    %c0_18 = arith.constant 0 : index
    %c0_19 = arith.constant 0 : index
    %c0_20 = arith.constant 0 : index
    %32 = vector.load %arg5[%c0_17, %c0_18, %c0_19, %c0_20] : memref<1x3x8x128xf32, #tpu.memory_space<vmem>>, vector<1x1x8x128xf32>
    %33 = vector.shape_cast %32 : vector<1x1x8x128xf32> to vector<8x128xf32>
    %34 = vector.shape_cast %31 : vector<8x128xf32> to vector<1x1x8x128xf32>
    tpu.vector_store %arg5[%c0_17, %c0_18, %c0_19, %c0_20], %34 {strides = array<i32>} : memref<1x3x8x128xf32, #tpu.memory_space<vmem>>, vector<1x1x8x128xf32>,
    %c0_21 = arith.constant 0 : index
    %c1 = arith.constant 1 : index
    %c0_22 = arith.constant 0 : index
    %c0_23 = arith.constant 0 : index
    %35 = vector.load %arg5[%c0_21, %c1, %c0_22, %c0_23] : memref<1x3x8x128xf32, #tpu.memory_space<vmem>>, vector<1x1x8x128xf32>
    %36 = vector.shape_cast %35 : vector<1x1x8x128xf32> to vector<8x128xf32>
    %37 = vector.shape_cast %26 : vector<32x128xf32> to vector<4x8x128xf32>
    %cst_24 = arith.constant dense<0.000000e+00> : vector<8x128xf32>
    %38 = vector.multi_reduction <add>, %37, %cst_24 [0] : vector<4x8x128xf32> to vector<8x128xf32>
    %39 = arith.addf %36, %38 : vector<8x128xf32>
    %c0_25 = arith.constant 0 : index
    %c1_26 = arith.constant 1 : index
    %c0_27 = arith.constant 0 : index
    %c0_28 = arith.constant 0 : index
    %40 = vector.load %arg5[%c0_25, %c1_26, %c0_27, %c0_28] : memref<1x3x8x128xf32, #tpu.memory_space<vmem>>, vector<1x1x8x128xf32>
    %41 = vector.shape_cast %40 : vector<1x1x8x128xf32> to vector<8x128xf32>
    %42 = vector.shape_cast %39 : vector<8x128xf32> to vector<1x1x8x128xf32>
    tpu.vector_store %arg5[%c0_25, %c1_26, %c0_27, %c0_28], %42 {strides = array<i32>} : memref<1x3x8x128xf32, #tpu.memory_space<vmem>>, vector<1x1x8x128xf32>,
    return
  }
  func.func @transform_0(%arg0: i32, %arg1: i32, %arg2: i32) -> (i32, i32, i32) {
    %c4_i32 = arith.constant 4 : i32
    %0 = arith.muli %arg0, %c4_i32 : i32
    %1 = arith.addi %0, %arg2 : i32
    %c0_i32 = arith.constant 0 : i32
    %c0_i32_0 = arith.constant 0 : i32
    return %1, %arg1, %c0_i32 : i32, i32, i32
  }
  func.func @transform_1(%arg0: i32, %arg1: i32, %arg2: i32) -> (i32, i32, i32) {
    %c0_i32 = arith.constant 0 : i32
    %c0_i32_0 = arith.constant 0 : i32
    return %arg0, %arg1, %c0_i32 : i32, i32, i32
  }
  func.func @transform_2(%arg0: i32, %arg1: i32, %arg2: i32) -> (i32, i32, i32, i32) {
    %c1_i32 = arith.constant 1 : i32
    %0 = arith.muli %arg0, %c1_i32 : i32
    %1 = arith.addi %0, %arg1 : i32
    %c0_i32 = arith.constant 0 : i32
    %c0_i32_0 = arith.constant 0 : i32
    %c0_i32_1 = arith.constant 0 : i32
    %c0_i32_2 = arith.constant 0 : i32
    return %1, %c0_i32, %c0_i32_0, %c0_i32_1 : i32, i32, i32, i32
  }
}

</mosaic_0001>

<llo_original>
// kernel: tpu_custom_call.1
$region0: #{tpu_custom_call.1}
  #allocation0 [shape = 'u32[]', space=smem, size = 0x4, offset = 0x4, fixed_abs, tag = 'smem constant byte address 0x4 - core index']
  #allocation1 [shape = 'u32[72,128]{1,0:T(1,128)}', space=vmem, size = 0x9000, scoped, tag = 'internal scratch']
  %s0 = inlined_call_operand.hbm [shape: f32[8,32,128], index: 0, kind: input, shape index: {}]
  %s1 = inlined_call_operand.hbm [shape: s32[2,32,128], index: 1, kind: input, shape index: {}]
  %s2 = inlined_call_operand.hbm [shape: f32[2,3,8,128], index: 2, kind: output, shape index: {}]
  %s3 = sld [smem:[#allocation0]]
  $region53: #{tpu_custom_call.1} parent=0
    _
  %s5 = ssub.s32 1, %s3
  %s6 = scalar_select 0, %s5, %s3
  $region1: #{tpu_custom_call.1} parent=0
    #allocation2 [shape = 'u8[32768]{0}', space=vmem, size = 0x8000, scoped, tag = 'input window, operand 0']
    #allocation3 [shape = 's32[2]{0}', space=sflag, size = 0x8, scoped, tag = 'scoped memory for tpu_custom_call.1']
    #allocation4 [shape = 's32[2]{0}', space=sflag, size = 0x8, scoped, tag = 'scoped memory for tpu_custom_call.1']
    #allocation5 [shape = 'u8[32768]{0}', space=vmem, size = 0x8000, scoped, tag = 'input window, operand 1']
    #allocation6 [shape = 's32[2]{0}', space=sflag, size = 0x8, scoped, tag = 'scoped memory for tpu_custom_call.1']
    #allocation7 [shape = 'u8[24576]{0}', space=vmem, size = 0x6000, scoped, tag = 'output window, operand 0']
    %7 = vsyncpa [#allocation3], 0
    %s8 = scalar_lea.sflag [#allocation3], 1
    %9 = vsyncpa %s8, 0
    %10 = vsyncpa [#allocation6], 0
    %s11 = scalar_lea.sflag [#allocation6], 1
    %12 = vsyncpa %s11, 0
    %13 = vsyncpa [#allocation4], 0
    %s14 = scalar_lea.sflag [#allocation4], 1
    %15 = vsyncpa %s14, 0
    loop: start=0, step=1, limit=10
    $region2: #{tpu_custom_call.1} parent=1 // loop_pre_header
      _
    $region3: #{tpu_custom_call.1} parent=1 // loop_header
      %s17 = sphi 0, %s21
      %p18 = scmp.ge.s32.totalorder %s17, 10
      %s24 = sphi 0, %s43
      %s25 = sphi 0, %s39
      %s26 = sphi 0, %s35
      %s27 = sphi 0, %s24
      %s28 = sphi 0, %s25
      %s29 = sphi 0, %s26
      %s30 = sphi 0, %s27
      %s31 = sphi 0, %s28
      %s32 = sphi 0, %s29
      %s52 = sphi 0, %s54
      %s55 = sphi 0, %s52
      %s56 = sphi 0, %s55
      %s72 = sphi 0, %s56
      %s80 = sphi 0, %s82
      %s83 = sphi 0, %s80
      %s84 = sphi 0, %s83
      %s100 = sphi 0, %s84
      %s108 = sphi 0, %s110
      %s111 = sphi 0, %s108
      %s112 = sphi 0, %s111
      %s128 = sphi 0, %s112
    $region4: #{tpu_custom_call.1} parent=1 // loop_header_branch
      %20 = sbr.rel (%p18) target = $region8
    $region5: #{tpu_custom_call.1} parent=1 // loop_body
      %s22 = ssub.s32 %s17, 1
      %s23 = ssub.s32 %s17, 2
      %s33 = sadd.s32 1, %s26
      %p34 = scmp.ge.s32.totalorder %s33, 4
      %s35 = scalar_select %p34, 0, %s33
      %s36 = sadd.s32 1, %s25
      %s37 = scalar_select %p34, %s36, %s25
      %p38 = scmp.ge.s32.totalorder %s37, 1
      %s39 = scalar_select %p38, 0, %s37
      %s40 = sadd.s32 1, %s24
      %s41 = scalar_select %p38, %s40, %s24
      %p42 = scmp.ge.s32.totalorder %s41, 2
      %s43 = scalar_select %p42, 0, %s41
      %s44 = smul.u32 %s24, 4
      %s45 = sadd.s32 %s44, %s26
      %s46 = smul.u32 %s43, 4
      %s47 = sadd.s32 %s46, %s35
      %s48 = ssub.s32 %s45, %s47
      %s49 = ssub.s32 %s25, %s39
      %s50 = sor.u32 %s48, %s49
      %p51 = scmp.eq.s32.totalorder %s50, 0
      %s53 = sadd.s32 %s52, 1
      %s54 = scalar_select %p51, %s52, %s53
      %p57 = pneg %p51
      %p58 = scmp.eq.s32.totalorder %s17, 7
      %p59 = por %p57, %p58
      %p60 = scmp.ne.s32.totalorder %s52, %s55
      %p61 = scmp.eq.s32.totalorder %s17, 0
      %p62 = por %p60, %p61
      %p63 = scmp.ne.s32.totalorder %s52, %s55
      %p64 = scmp.eq.s32.totalorder %s22, 7
      %p65 = por %p63, %p64
      %p66 = scmp.ne.s32.totalorder %s55, %s56
      %p67 = scmp.eq.s32.totalorder %s22, 0
      %p68 = por %p66, %p67
      %p69 = scmp.ne.s32.totalorder %s55, %s56
      %p70 = scmp.eq.s32.totalorder %s23, 7
      %p71 = por %p69, %p70
      %p73 = scmp.ne.s32.totalorder %s56, %s72
      %p74 = scmp.eq.s32.totalorder %s23, 0
      %p75 = por %p73, %p74
      %s76 = ssub.s32 %s24, %s43
      %s77 = ssub.s32 %s25, %s39
      %s78 = sor.u32 %s76, %s77
      %p79 = scmp.eq.s32.totalorder %s78, 0
      %s81 = sadd.s32 %s80, 1
      %s82 = scalar_select %p79, %s80, %s81
      %p85 = pneg %p79
      %p86 = scmp.eq.s32.totalorder %s17, 7
      %p87 = por %p85, %p86
      %p88 = scmp.ne.s32.totalorder %s80, %s83
      %p89 = scmp.eq.s32.totalorder %s17, 0
      %p90 = por %p88, %p89
      %p91 = scmp.ne.s32.totalorder %s80, %s83
      %p92 = scmp.eq.s32.totalorder %s22, 7
      %p93 = por %p91, %p92
      %p94 = scmp.ne.s32.totalorder %s83, %s84
      %p95 = scmp.eq.s32.totalorder %s22, 0
      %p96 = por %p94, %p95
      %p97 = scmp.ne.s32.totalorder %s83, %s84
      %p98 = scmp.eq.s32.totalorder %s23, 7
      %p99 = por %p97, %p98
      %p101 = scmp.ne.s32.totalorder %s84, %s100
      %p102 = scmp.eq.s32.totalorder %s23, 0
      %p103 = por %p101, %p102
      %s104 = sadd.s32 %s24, %s25
      %s105 = sadd.s32 %s43, %s39
      %s106 = ssub.s32 %s104, %s105
      %p107 = scmp.eq.s32.totalorder %s106, 0
      %s109 = sadd.s32 %s108, 1
      %s110 = scalar_select %p107, %s108, %s109
      %p113 = pneg %p107
      %p114 = scmp.eq.s32.totalorder %s17, 7
      %p115 = por %p113, %p114
      %p116 = scmp.ne.s32.totalorder %s108, %s111
      %p117 = scmp.eq.s32.totalorder %s17, 0
      %p118 = por %p116, %p117
      %p119 = scmp.ne.s32.totalorder %s108, %s111
      %p120 = scmp.eq.s32.totalorder %s22, 7
      %p121 = por %p119, %p120
      %p122 = scmp.ne.s32.totalorder %s111, %s112
      %p123 = scmp.eq.s32.totalorder %s22, 0
      %p124 = por %p122, %p123
      %p125 = scmp.ne.s32.totalorder %s111, %s112
      %p126 = scmp.eq.s32.totalorder %s23, 7
      %p127 = por %p125, %p126
      %p129 = scmp.ne.s32.totalorder %s112, %s128
      %p130 = scmp.eq.s32.totalorder %s23, 0
      %p131 = por %p129, %p130
      %p132 = scmp.le.s32.totalorder 1, %s17
      %p133 = scmp.lt.s32.totalorder %s17, 9
      %p134 = pnand %p132, %p133
      %p135 = pneg %p134
      // Predicated region
      $region9: #{tpu_custom_call.1} parent=5 // pred_check
        _
      $region10: #{tpu_custom_call.1} parent=5 // pred_check_branch
        %137 = sbr.rel (%p134) target = $region12
      $region11: #{tpu_custom_call.1} parent=5 // pred_region
        %s138 = ssub.s32 %s17, 1
      $region12: #{tpu_custom_call.1} parent=5 // pred_fallthru
        _
      %p139 = scmp.lt.s32.totalorder %s17, 8
      // Predicated region
      $region13: #{tpu_custom_call.1} parent=5 // pred_check
        %p140 = pneg %p139
      $region14: #{tpu_custom_call.1} parent=5 // pred_check_branch
        %142 = sbr.rel (%p140) target = $region16
      $region15: #{tpu_custom_call.1} parent=5 // pred_region
        // Predicated region
        $region17: #{tpu_custom_call.1} parent=15 // pred_check
          %p143 = pneg %p62
        $region18: #{tpu_custom_call.1} parent=15 // pred_check_branch
          %145 = sbr.rel (%p143) target = $region20
        $region19: #{tpu_custom_call.1} parent=15 // pred_region
          %s146 = sand.u32 %s52, 1
          %s147 = scalar_lea.sflag [#allocation3], %s146
          %s148 = sand.u32 %s52, 1
          %s149 = smul.addr %s148, 32
          %s150 = scalar_lea.vmem [#allocation2], %s149
          %s151 = smul.u32 %s24, 4
          %s152 = sadd.s32 %s151, %s26
          %s153 = smul.u32 4, %s25
          %155 = vsyncadd %s147, 0
          %s156 = smul.addr %s152, 4
          %s157 = sadd.s32 %s153, %s156
          %s158 = smul.addr %s157, 8
          %s159 = scalar_lea.hbm %s0, %s158
          %s160 = sshll.u32 %s159, 4
          %s161 = int_to_ptr.hbm [resolvable:$true] %s160
          %s162 = sshll.u32 %s150, 4
          %s163 = int_to_ptr.vmem [resolvable:$true] %s162
          %168 = dma.hbm_to_vmem [thread:$0]  %s161, 512, %s163, %s147, 128, 128, 8
        $region20: #{tpu_custom_call.1} parent=15 // pred_fallthru
          _
        // Predicated region
        $region21: #{tpu_custom_call.1} parent=15 // pred_check
          %p169 = pneg %p90
        $region22: #{tpu_custom_call.1} parent=15 // pred_check_branch
          %171 = sbr.rel (%p169) target = $region24
        $region23: #{tpu_custom_call.1} parent=15 // pred_region
          %s172 = sand.u32 %s80, 1
          %s173 = scalar_lea.sflag [#allocation6], %s172
          %s174 = sand.u32 %s80, 1
          %s175 = smul.addr %s174, 32
          %s176 = scalar_lea.vmem [#allocation5], %s175
          %s177 = smul.u32 4, %s25
          %179 = vsyncadd %s173, 0
          %s180 = smul.addr %s24, 4
          %s181 = sadd.s32 %s177, %s180
          %s182 = smul.addr %s181, 8
          %s183 = scalar_lea.hbm %s1, %s182
          %s184 = sshll.u32 %s183, 4
          %s185 = int_to_ptr.hbm [resolvable:$true] %s184
          %s186 = sshll.u32 %s176, 4
          %s187 = int_to_ptr.vmem [resolvable:$true] %s186
          %192 = dma.hbm_to_vmem [thread:$0]  %s185, 512, %s187, %s173, 128, 128, 8
        $region24: #{tpu_custom_call.1} parent=15 // pred_fallthru
          _
      $region16: #{tpu_custom_call.1} parent=5 // pred_fallthru
        _
      %p193 = scmp.le.s32.totalorder 1, %s17
      %p194 = scmp.lt.s32.totalorder %s17, 9
      %p195 = pnand %p193, %p194
      %p196 = pneg %p195
      // Predicated region
      $region25: #{tpu_custom_call.1} parent=5 // pred_check
        _
      $region26: #{tpu_custom_call.1} parent=5 // pred_check_branch
        %198 = sbr.rel (%p195) target = $region28
      $region27: #{tpu_custom_call.1} parent=5 // pred_region
        %s199 = ssub.s32 %s17, 1
        %s200 = sand.u32 %s55, 1
        %s201 = scalar_lea.sflag [#allocation3], %s200
        %s202 = sand.u32 %s55, 1
        %s203 = smul.addr %s202, 32
        %s204 = scalar_lea.vmem [#allocation2], %s203
        // Predicated region
        $region29: #{tpu_custom_call.1} parent=27 // pred_check
          %p205 = pneg %p68
        $region30: #{tpu_custom_call.1} parent=27 // pred_check_branch
          %207 = sbr.rel (%p205) target = $region32
        $region31: #{tpu_custom_call.1} parent=27 // pred_region
          %209 = dma.done %s201, 512
        $region32: #{tpu_custom_call.1} parent=27 // pred_fallthru
          _
        %s210 = sand.u32 %s83, 1
        %s211 = scalar_lea.sflag [#allocation6], %s210
        %s212 = sand.u32 %s83, 1
        %s213 = smul.addr %s212, 32
        %s214 = scalar_lea.vmem [#allocation5], %s213
        // Predicated region
        $region33: #{tpu_custom_call.1} parent=27 // pred_check
          %p215 = pneg %p96
        $region34: #{tpu_custom_call.1} parent=27 // pred_check_branch
          %217 = sbr.rel (%p215) target = $region36
        $region35: #{tpu_custom_call.1} parent=27 // pred_region
          %219 = dma.done %s211, 512
        $region36: #{tpu_custom_call.1} parent=27 // pred_fallthru
          _
        %s220 = sand.u32 %s55, 1
        %s221 = scalar_lea.sflag [#allocation3], %s220
        %s222 = sand.u32 %s55, 1
        %s223 = smul.addr %s222, 32
        %s224 = scalar_lea.vmem [#allocation2], %s223
        %p225 = pneg %p68
        %p226 = pneg %p65
        %s227 = sand.u32 %s83, 1
        %s228 = scalar_lea.sflag [#allocation6], %s227
        %s229 = sand.u32 %s83, 1
        %s230 = smul.addr %s229, 32
        %s231 = scalar_lea.vmem [#allocation5], %s230
        %p232 = pneg %p96
        %p233 = pneg %p93
        %p234 = pneg %p124
        %p235 = pneg %p121
        %s236 = sand.u32 %s111, 1
        %s237 = scalar_lea.sflag [#allocation4], %s236
        %s238 = sand.u32 %s111, 1
        %s239 = smul.addr %s238, 24
        %s240 = scalar_lea.vmem [#allocation7], %s239
        %s241 = smul.u32 %s27, 4
        %s242 = sadd.s32 %s241, %s29
        %s243 = smul.u32 4, %s28
        %s244 = smul.u32 4, %s28
        %s245 = sadd.s32 %s27, %s28
        %p246 = scmp.eq.s32.totalorder %s29, 0
        // Predicated region
        $region37: #{tpu_custom_call.1} parent=27 // pred_check
          %p247 = pneg %p246
        $region38: #{tpu_custom_call.1} parent=27 // pred_check_branch
          %249 = sbr.rel (%p247) target = $region40
        $region39: #{tpu_custom_call.1} parent=27 // pred_region
          %250 = vst [vmem:[%s240] sm:$0xff] 0.0
          %251 = vst [vmem:[%s240 + $0x8] sm:$0xff] 0.0
          %252 = vst [vmem:[%s240 + $0x10] sm:$0xff] 0.0
          %v253 = vld [vmem:[%s214] sm:$0xff]
          %v254 = vld [vmem:[%s214 + $0x8] sm:$0xff]
          %v255 = vld [vmem:[%s214 + $0x10] sm:$0xff]
          %v256 = vld [vmem:[%s214 + $0x18] sm:$0xff]
          %vm257 = vcmp.ge.s32.totalorder %v253, 0
          %vm258 = vcmp.ge.s32.totalorder %v254, 0
          %vm259 = vcmp.ge.s32.totalorder %v255, 0
          %vm260 = vcmp.ge.s32.totalorder %v256, 0
          %vm261 = vcmp.lt.s32.totalorder %v253, 4
          %vm262 = vcmp.lt.s32.totalorder %v254, 4
          %vm263 = vcmp.lt.s32.totalorder %v255, 4
          %vm264 = vcmp.lt.s32.totalorder %v256, 4
          %vm265 = vmand %vm257, %vm261
          %vm266 = vmand %vm258, %vm262
          %vm267 = vmand %vm259, %vm263
          %vm268 = vmand %vm260, %vm264
          %vm269 = vcmp.ne.s32.totalorder %v253, 255
          %vm270 = vcmp.ne.s32.totalorder %v254, 255
          %vm271 = vcmp.ne.s32.totalorder %v255, 255
          %vm272 = vcmp.ne.s32.totalorder %v256, 255
          %vm273 = vmand %vm265, %vm269
          %vm274 = vmand %vm266, %vm270
          %vm275 = vmand %vm267, %vm271
          %vm276 = vmand %vm268, %vm272
          %v277 = vsel %vm273, 1, 0
          %v278 = vsel %vm274, 1, 0
          %v279 = vsel %vm275, 1, 0
          %v280 = vsel %vm276, 1, 0
          %v281 = vcvt.s32.f32 %v277
          %v282 = vcvt.s32.f32 %v278
          %v283 = vcvt.s32.f32 %v279
          %v284 = vcvt.s32.f32 %v280
          %v285 = vadd.f32 %v281, 0.0
          %v286 = vadd.f32 %v282, 0.0
          %v287 = vadd.f32 %v283, 0.0
          %v288 = vadd.f32 %v284, 0.0
          %v289 = vadd.f32 %v285, %v286
          %v290 = vadd.f32 %v289, %v287
          %v291 = vadd.f32 %v290, %v288
          %s292 = scalar_lea.vmem %s240, 16 [#allocation7]
          %293 = vst [vmem:[%s292] sm:$0xff] %v291
        $region40: #{tpu_custom_call.1} parent=27 // pred_fallthru
          _
        %v294 = vld [vmem:[%s204] sm:$0xff]
        %v295 = vld [vmem:[%s204 + $0x8] sm:$0xff]
        %v296 = vld [vmem:[%s204 + $0x10] sm:$0xff]
        %v297 = vld [vmem:[%s204 + $0x18] sm:$0xff]
        %v298 = vld [vmem:[%s214] sm:$0xff]
        %v299 = vld [vmem:[%s214 + $0x8] sm:$0xff]
        %v300 = vld [vmem:[%s214 + $0x10] sm:$0xff]
        %v301 = vld [vmem:[%s214 + $0x18] sm:$0xff]
        %v302 = vmul.f32 %v294, 0.5
        %v303 = vmul.f32 %v295, 0.5
        %v304 = vmul.f32 %v296, 0.5
        %v305 = vmul.f32 %v297, 0.5
        %v306 = vtanh.pop %v302
        %v307 = vtanh.pop %v303
        %v308 = vtanh.pop %v304
        %v309 = vtanh.pop %v305
        %v310 = vmul.f32 %v306, 0.5
        %v311 = vmul.f32 %v307, 0.5
        %v312 = vmul.f32 %v308, 0.5
        %v313 = vmul.f32 %v309, 0.5
        %v314 = vstv %s29
        %vm315 = vcmp.eq.s32.totalorder %v298, %v314
        %vm316 = vcmp.eq.s32.totalorder %v299, %v314
        %vm317 = vcmp.eq.s32.totalorder %v300, %v314
        %vm318 = vcmp.eq.s32.totalorder %v301, %v314
        %v319 = vadd.f32 %v310, 0.0
        %v320 = vadd.f32 %v311, 0.0
        %v321 = vadd.f32 %v312, 0.0
        %v322 = vadd.f32 %v313, 0.0
        %v323 = vadd.f32 %v310, 0.5
        %v324 = vadd.f32 %v311, 0.5
        %v325 = vadd.f32 %v312, 0.5
        %v326 = vadd.f32 %v313, 0.5
        %v327 = vsel %vm315, %v323, 0.0
        %v328 = vsel %vm316, %v324, 0.0
        %v329 = vsel %vm317, %v325, 0.0
        %v330 = vsel %vm318, %v326, 0.0
        %v331 = vadd.f32 %v327, 0.0
        %v332 = vadd.f32 %v328, 0.0
        %v333 = vadd.f32 %v329, 0.0
        %v334 = vadd.f32 %v330, 0.0
        %v335 = vld [vmem:[%s240] sm:$0xff]
        %v336 = vadd.f32 %v319, %v320
        %v337 = vadd.f32 %v336, %v321
        %v338 = vadd.f32 %v337, %v322
        %v339 = vadd.f32 %v335, %v338
        %340 = vst [vmem:[%s240] sm:$0xff] %v339
        %s341 = scalar_lea.vmem %s240, 8 [#allocation7]
        %v342 = vld [vmem:[%s341] sm:$0xff]
        %v343 = vadd.f32 %v331, %v332
        %v344 = vadd.f32 %v343, %v333
        %v345 = vadd.f32 %v344, %v334
        %v346 = vadd.f32 %v342, %v345
        %347 = vst [vmem:[%s341] sm:$0xff] %v346
        %s348 = sand.u32 %s111, 1
        %s349 = scalar_lea.sflag [#allocation4], %s348
        %s350 = sand.u32 %s111, 1
        %s351 = smul.addr %s350, 24
        %s352 = scalar_lea.vmem [#allocation7], %s351
        // Predicated region
        $region41: #{tpu_custom_call.1} parent=27 // pred_check
          %p353 = pneg %p121
        $region42: #{tpu_custom_call.1} parent=27 // pred_check_branch
          %355 = sbr.rel (%p353) target = $region44
        $region43: #{tpu_custom_call.1} parent=27 // pred_region
          %s356 = sadd.s32 %s27, %s28
          %358 = vsyncadd %s349, 0
          %s359 = smul.addr %s356, 3
          %s360 = smul.addr %s359, 8
          %s361 = scalar_lea.hbm %s2, %s360
          %s362 = sshll.u32 %s352, 4
          %s363 = int_to_ptr.vmem [resolvable:$true] %s362
          %s364 = sshll.u32 %s361, 4
          %s365 = int_to_ptr.hbm [resolvable:$true] %s364
          %370 = dma.vmem_to_hbm [thread:$0]  %s363, 384, %s365, %s349, 128, 128, 8
        $region44: #{tpu_custom_call.1} parent=27 // pred_fallthru
          _
      $region28: #{tpu_custom_call.1} parent=5 // pred_fallthru
        _
      %p371 = scmp.le.s32.totalorder 2, %s17
      // Predicated region
      $region45: #{tpu_custom_call.1} parent=5 // pred_check
        %p372 = pneg %p371
      $region46: #{tpu_custom_call.1} parent=5 // pred_check_branch
        %374 = sbr.rel (%p372) target = $region48
      $region47: #{tpu_custom_call.1} parent=5 // pred_region
        %s375 = ssub.s32 %s17, 2
        // Predicated region
        $region49: #{tpu_custom_call.1} parent=47 // pred_check
          %p376 = pneg %p127
        $region50: #{tpu_custom_call.1} parent=47 // pred_check_branch
          %378 = sbr.rel (%p376) target = $region52
        $region51: #{tpu_custom_call.1} parent=47 // pred_region
          %s379 = sand.u32 %s112, 1
          %s380 = scalar_lea.sflag [#allocation4], %s379
          %s381 = sand.u32 %s112, 1
          %s382 = smul.addr %s381, 24
          %s383 = scalar_lea.vmem [#allocation7], %s382
          %385 = dma.done %s380, 384
        $region52: #{tpu_custom_call.1} parent=47 // pred_fallthru
          _
      $region48: #{tpu_custom_call.1} parent=5 // pred_fallthru
        _
    $region6: #{tpu_custom_call.1} parent=1 // loop_footer
      %s21 = sadd.s32 1, %s17
    $region7: #{tpu_custom_call.1} parent=1 // loop_footer_branch
      %16 = sbr.rel target = $region3
    $region8: #{tpu_custom_call.1} parent=1 // loop_exit
      _
    %386 = vsyncpa [#allocation3], 1
    %s387 = scalar_lea.sflag [#allocation3], 1
    %388 = vsyncpa %s387, 1
    %389 = vsyncpa [#allocation6], 1
    %s390 = scalar_lea.sflag [#allocation6], 1
    %391 = vsyncpa %s390, 1
    %392 = vsyncpa [#allocation4], 1
    %s393 = scalar_lea.sflag [#allocation4], 1
    %394 = vsyncpa %s393, 1

</llo_original>
